<compile_context>
chip_gen: v6e
topology: v6e:2x2x1
jax: 0.10.0
libtpu: 0.0.40
codegen_flags: <defaults>
</compile_context>

<pallas_src>
import jax
import jax.numpy as jnp
from jax.experimental import pallas as pl
from jax.experimental.pallas import tpu as pltpu

HIDDEN = 10      # logical hidden width of the MLP
HP = 16          # hidden width padded to a multiple of 8 sublanes
CARRY = HIDDEN   # row index that carries the constant 1 through the activations


def _round_up(n, m):
    return ((n + m - 1) // m) * m


def _make_mlp_kernel(chunk, num_chunks):
    """chunk: lane width processed per inner step; num_chunks: inner steps per block."""

    def kernel(xT_ref, w1k_ref, b1k_ref, w2k_ref, w3k_ref, o_ref):
        w1k = w1k_ref[...]                                   # (HP, 1)   [w1; 0]
        w2k = w2k_ref[...]                                   # (HP, HP)  [[w2, b2],[0, 1]]
        w3k = w3k_ref[...]                                   # (1, HP)   [w3, b3]
        # Hoist the lane-broadcast of the (bias|carrier) column once per grid step;
        # inside the chunk loop it would be re-broadcast every iteration.
        b1b = jnp.broadcast_to(b1k_ref[...], (HP, chunk))    # (HP, chunk)

        def compute(xc):                                     # xc: (1, chunk), batch on lanes
            # Layer 1 (1 -> 10) on the MXU; K=1 padding is free since the MXU is idle.
            h1 = jnp.maximum(
                jnp.dot(w1k, xc, preferred_element_type=jnp.float32) + b1b, 0.0)
            # Layer 2 (10 -> 10); bias folded in via the carrier row -> only ReLU on VPU.
            h2 = jnp.maximum(
                jnp.dot(w2k, h1, preferred_element_type=jnp.float32), 0.0)
            # Layer 3 (10 -> 1); bias folded in via the carrier row -> no VPU/XLU work.
            return jnp.dot(w3k, h2, preferred_element_type=jnp.float32)   # (1, chunk)

        if num_chunks == 1:
            o_ref[...] = compute(xT_ref[...])
        else:
            def body(c, carry):
                start = pl.multiple_of(c * chunk, chunk)
                o_ref[:, pl.ds(start, chunk)] = compute(xT_ref[:, pl.ds(start, chunk)])
                return carry
            jax.lax.fori_loop(0, num_chunks, body, 0)

    return kernel


def pack_params(p):
    """PyTorch-layout params -> padded/augmented kernel layout (done once, host side)."""
    w1 = p["w1"].astype(jnp.float32)                 # (10, 1)
    b1 = p["b1"].astype(jnp.float32).reshape(-1)     # (10,)
    w2 = p["w2"].astype(jnp.float32)                 # (10, 10)
    b2 = p["b2"].astype(jnp.float32).reshape(-1)     # (10,)
    w3 = p["w3"].astype(jnp.float32)                 # (1, 10)
    b3 = p["b3"].astype(jnp.float32).reshape(-1)     # (1,)

    w1k = jnp.zeros((HP, 1), jnp.float32).at[:HIDDEN, 0].set(w1[:, 0])
    b1k = (jnp.zeros((HP, 1), jnp.float32)
           .at[:HIDDEN, 0].set(b1)
           .at[CARRY, 0].set(1.0))                   # carrier row: relu(0*x + 1) == 1
    w2k = (jnp.zeros((HP, HP), jnp.float32)
           .at[:HIDDEN, :HIDDEN].set(w2)
           .at[:HIDDEN, CARRY].set(b2)               # bias column picks up the carrier 1
           .at[CARRY, CARRY].set(1.0))               # carrier propagates: relu(1) == 1
    w3k = (jnp.zeros((1, HP), jnp.float32)
           .at[0, :HIDDEN].set(w3[0])
           .at[0, CARRY].set(b3[0]))                 # b3 folded into the matmul
    return {"w1k": w1k, "b1k": b1k, "w2k": w2k, "w3k": w3k}


def mlp_forward(x, params, *, max_block=131072, chunk=2048):
    """x: (B, 1) float32 -> (B, 1) float32."""
    B = x.shape[0]
    xT = x.astype(jnp.float32).reshape(1, B)   # (B,1) -> (1,B): batch on lanes, free reshape

    if B <= chunk:
        block, kchunk, num_chunks = B, B, 1    # tiny batch: single un-chunked block
    else:
        assert chunk % 128 == 0 and max_block % chunk == 0
        block = min(max_block, _round_up(B, chunk))
        kchunk, num_chunks = chunk, block // chunk
    num_blocks = pl.cdiv(B, block)             # ragged tail handled by masked write-back

    kp = pack_params(params)
    const = lambda i: (0, 0)                   # params stay resident in VMEM across steps

    out_T = pl.pallas_call(
        _make_mlp_kernel(kchunk, num_chunks),
        out_shape=jax.ShapeDtypeStruct((1, B), jnp.float32),
        grid=(num_blocks,),
        in_specs=[
            pl.BlockSpec((1, block), lambda i: (0, i)),   # x^T batch tile (lane dense)
            pl.BlockSpec((HP, 1), const),                 # w1 (padded)
            pl.BlockSpec((HP, 1), const),                 # b1 + carrier
            pl.BlockSpec((HP, HP), const),                # w2 | b2, carrier row
            pl.BlockSpec((1, HP), const),                 # w3 | b3
        ],
        out_specs=pl.BlockSpec((1, block), lambda i: (0, i)),
        compiler_params=pltpu.CompilerParams(
            dimension_semantics=("parallel",),
            vmem_limit_bytes=48 * 1024 * 1024,            # headroom for large batch tiles
        ),
        cost_estimate=pl.CostEstimate(
            flops=2 * (1 * 10 + 10 * 10 + 10 * 1) * B,
            transcendentals=0,
            bytes_accessed=8 * B + (HP * 2 + HP * HP + HP) * 4,
        ),
    )(xT, kp["w1k"], kp["b1k"], kp["w2k"], kp["w3k"])

    return out_T.reshape(B, 1)


def init_params(key):
    """PyTorch nn.Linear default init: U(-1/sqrt(fan_in), 1/sqrt(fan_in))."""
    ks = jax.random.split(key, 6)

    def lin(kw, kb, fan_in, fan_out):
        bound = 1.0 / (fan_in ** 0.5)
        w = jax.random.uniform(kw, (fan_out, fan_in), jnp.float32, -bound, bound)
        b = jax.random.uniform(kb, (fan_out,), jnp.float32, -bound, bound)
        return w, b

    w1, b1 = lin(ks[0], ks[1], 1, 10)
    w2, b2 = lin(ks[2], ks[3], 10, 10)
    w3, b3 = lin(ks[4], ks[5], 10, 1)
    return {"w1": w1, "b1": b1, "w2": w2, "b2": b2, "w3": w3, "b3": b3}


def mlp_reference(x, p):
    h1 = jnp.maximum(x @ p["w1"].T + p["b1"], 0.0)
    h2 = jnp.maximum(h1 @ p["w2"].T + p["b2"], 0.0)
    return h2 @ p["w3"].T + p["b3"]


if __name__ == "__main__":
    key = jax.random.PRNGKey(0)
    k_param, k_x1, k_x2 = jax.random.split(key, 3)
    params = init_params(k_param)

    # Small case consistent with the module: batch=8, in_features=1 (single tiny block).
    x_small = jax.random.normal(k_x1, (8, 1), dtype=jnp.float32)
    out_small = jax.block_until_ready(mlp_forward(x_small, params))
    ref_small = mlp_reference(x_small, params)
    assert out_small.shape == (8, 1), out_small.shape
    assert jnp.allclose(out_small, ref_small, atol=1e-4, rtol=1e-4), (
        float(jnp.max(jnp.abs(out_small - ref_small))))

    # Larger ragged batch: exercises the in-kernel chunk loop, the multi-block grid and
    # the masked ragged-tail block (no host-side pad/slice).
    x_big = jax.random.normal(k_x2, (5000, 1), dtype=jnp.float32)
    out_big = jax.block_until_ready(
        mlp_forward(x_big, params, max_block=2048, chunk=512))
    ref_big = mlp_reference(x_big, params)
    assert out_big.shape == (5000, 1), out_big.shape
    assert jnp.allclose(out_big, ref_big, atol=1e-4, rtol=1e-4), (
        float(jnp.max(jnp.abs(out_big - ref_big))))

    print("KERNEL_OK")
</pallas_src>

<mosaic_0001>
module attributes {stable_mosaic.version = 11 : i64} {
  func.func @kernel(%arg0: i32, %arg1: memref<1x8xf32, #tpu.memory_space<vmem>>, %arg2: memref<16x1xf32, #tpu.memory_space<vmem>>, %arg3: memref<16x1xf32, #tpu.memory_space<vmem>>, %arg4: memref<16x16xf32, #tpu.memory_space<vmem>>, %arg5: memref<1x16xf32, #tpu.memory_space<vmem>>, %arg6: memref<1x8xf32, #tpu.memory_space<vmem>>) attributes {dimension_semantics = [#tpu.dimension_semantics<parallel>], iteration_bounds = array<i64: 1>, scalar_prefetch = 0 : i64, scratch_operands = 0 : i64, tpu.core_type = #tpu.core_type<tc>, window_params = [{transform_indices = @transform_0, window_bounds = array<i64: 1, 8>}, {pipeline_mode = #tpu.pipeline_mode<synchronous>, transform_indices = @transform_1, window_bounds = array<i64: 16, 1>}, {pipeline_mode = #tpu.pipeline_mode<synchronous>, transform_indices = @transform_2, window_bounds = array<i64: 16, 1>}, {pipeline_mode = #tpu.pipeline_mode<synchronous>, transform_indices = @transform_3, window_bounds = array<i64: 16, 16>}, {pipeline_mode = #tpu.pipeline_mode<synchronous>, transform_indices = @transform_4, window_bounds = array<i64: 1, 16>}, {transform_indices = @transform_5, window_bounds = array<i64: 1, 8>}]} {
    %c0 = arith.constant 0 : index
    %c0_0 = arith.constant 0 : index
    %0 = vector.load %arg2[%c0, %c0_0] : memref<16x1xf32, #tpu.memory_space<vmem>>, vector<16x1xf32>
    %c0_1 = arith.constant 0 : index
    %c0_2 = arith.constant 0 : index
    %1 = vector.load %arg4[%c0_1, %c0_2] : memref<16x16xf32, #tpu.memory_space<vmem>>, vector<16x16xf32>
    %c0_3 = arith.constant 0 : index
    %c0_4 = arith.constant 0 : index
    %2 = vector.load %arg5[%c0_3, %c0_4] : memref<1x16xf32, #tpu.memory_space<vmem>>, vector<1x16xf32>
    %c0_5 = arith.constant 0 : index
    %c0_6 = arith.constant 0 : index
    %3 = vector.load %arg3[%c0_5, %c0_6] : memref<16x1xf32, #tpu.memory_space<vmem>>, vector<16x1xf32>
    %4 = vector.shape_cast %3 : vector<16x1xf32> to vector<16x1xf32>
    %5 = vector.broadcast %4 : vector<16x1xf32> to vector<16x8xf32>
    %c0_7 = arith.constant 0 : index
    %c0_8 = arith.constant 0 : index
    %6 = vector.load %arg1[%c0_7, %c0_8] : memref<1x8xf32, #tpu.memory_space<vmem>>, vector<1x8xf32>
    %cst = arith.constant dense<0.000000e+00> : vector<16x8xf32>
    %7 = tpu.matmul %0, %6, %cst {dimension_numbers = #tpu.dot_dimension_numbers<[1], [0], [0], [1], [0, 0, 1, 1], [], []>} : vector<16x1xf32>, vector<1x8xf32>, vector<16x8xf32> -> vector<16x8xf32>
    %8 = arith.addf %7, %5 : vector<16x8xf32>
    %cst_9 = arith.constant 0.000000e+00 : f32
    %9 = vector.broadcast %cst_9 : f32 to vector<16x8xf32>
    %10 = arith.maximumf %8, %9 : vector<16x8xf32>
    %cst_10 = arith.constant dense<0.000000e+00> : vector<16x8xf32>
    %11 = tpu.matmul %1, %10, %cst_10 {dimension_numbers = #tpu.dot_dimension_numbers<[1], [0], [0], [1], [0, 0, 1, 1], [], []>} : vector<16x16xf32>, vector<16x8xf32>, vector<16x8xf32> -> vector<16x8xf32>
    %cst_11 = arith.constant 0.000000e+00 : f32
    %12 = vector.broadcast %cst_11 : f32 to vector<16x8xf32>
    %13 = arith.maximumf %11, %12 : vector<16x8xf32>
    %cst_12 = arith.constant dense<0.000000e+00> : vector<1x8xf32>
    %14 = tpu.matmul %2, %13, %cst_12 {dimension_numbers = #tpu.dot_dimension_numbers<[1], [0], [0], [1], [0, 0, 1, 1], [], []>} : vector<1x16xf32>, vector<16x8xf32>, vector<1x8xf32> -> vector<1x8xf32>
    %c0_13 = arith.constant 0 : index
    %c0_14 = arith.constant 0 : index
    %15 = vector.load %arg6[%c0_13, %c0_14] : memref<1x8xf32, #tpu.memory_space<vmem>>, vector<1x8xf32>
    tpu.vector_store %arg6[%c0_13, %c0_14], %14 {strides = array<i32>} : memref<1x8xf32, #tpu.memory_space<vmem>>, vector<1x8xf32>,
    return
  }
  func.func @transform_0(%arg0: i32) -> (i32, i32) {
    %c0_i32 = arith.constant 0 : i32
    %c0_i32_0 = arith.constant 0 : i32
    return %c0_i32, %arg0 : i32, i32
  }
  func.func @transform_1(%arg0: i32) -> (i32, i32) {
    %c0_i32 = arith.constant 0 : i32
    %c0_i32_0 = arith.constant 0 : i32
    %c0_i32_1 = arith.constant 0 : i32
    return %c0_i32, %c0_i32_0 : i32, i32
  }
  func.func @transform_2(%arg0: i32) -> (i32, i32) {
    %c0_i32 = arith.constant 0 : i32
    %c0_i32_0 = arith.constant 0 : i32
    %c0_i32_1 = arith.constant 0 : i32
    return %c0_i32, %c0_i32_0 : i32, i32
  }
  func.func @transform_3(%arg0: i32) -> (i32, i32) {
    %c0_i32 = arith.constant 0 : i32
    %c0_i32_0 = arith.constant 0 : i32
    %c0_i32_1 = arith.constant 0 : i32
    return %c0_i32, %c0_i32_0 : i32, i32
  }
  func.func @transform_4(%arg0: i32) -> (i32, i32) {
    %c0_i32 = arith.constant 0 : i32
    %c0_i32_0 = arith.constant 0 : i32
    %c0_i32_1 = arith.constant 0 : i32
    return %c0_i32, %c0_i32_0 : i32, i32
  }
  func.func @transform_5(%arg0: i32) -> (i32, i32) {
    %c0_i32 = arith.constant 0 : i32
    %c0_i32_0 = arith.constant 0 : i32
    return %c0_i32, %arg0 : i32, i32
  }
}

</mosaic_0001>

<llo_original>
// kernel: tpu_custom_call.1
$region0: #{tpu_custom_call.1}
  #allocation0 [shape = 'u32[]', space=smem, size = 0x4, offset = 0x4, fixed_abs, tag = 'smem constant byte address 0x4 - core index']
  #allocation1 [shape = 'u32[144,128]{1,0:T(1,128)}', space=vmem, size = 0x12000, scoped, tag = 'internal scratch']
  %s0 = inlined_call_operand.vmem [shape: f32[1,8], index: 0, kind: input, shape index: {}]
  %s1 = inlined_call_operand.vmem [shape: f32[16,1], index: 1, kind: input, shape index: {}]
  %s2 = inlined_call_operand.vmem [shape: f32[16,1], index: 2, kind: input, shape index: {}]
  %s3 = inlined_call_operand.vmem [shape: f32[16,16], index: 3, kind: input, shape index: {}]
  %s4 = inlined_call_operand.vmem [shape: f32[1,16], index: 4, kind: input, shape index: {}]
  %s5 = inlined_call_operand.hbm [shape: f32[1,8], index: 5, kind: output, shape index: {}]
  %s6 = sld [smem:[#allocation0]]
  $region30: #{tpu_custom_call.1} parent=0
    _
  %s8 = ssub.s32 1, %s6
  %s9 = scalar_select 0, %s8, %s6
  $region1: #{tpu_custom_call.1} parent=0
    #allocation2 [shape = 'u8[512]{0}', space=vmem, size = 0x400, scoped, tag = 'output window, operand 0, single buffered']
    #allocation3 [shape = 's32[1]{0}', space=sflag, size = 0x4, scoped, tag = 'scoped memory for tpu_custom_call.1']
    %10 = vsyncpa [#allocation3], 0
    // Predicated region
    $region2: #{tpu_custom_call.1} parent=1 // pred_check
      _
    $region3: #{tpu_custom_call.1} parent=1 // pred_check_branch
      %12 = sbr.rel (0) target = $region5
    $region4: #{tpu_custom_call.1} parent=1 // pred_region
      _
    $region5: #{tpu_custom_call.1} parent=1 // pred_fallthru
      _
    // Predicated region
    $region6: #{tpu_custom_call.1} parent=1 // pred_check
      _
    $region7: #{tpu_custom_call.1} parent=1 // pred_check_branch
      %14 = sbr.rel (0) target = $region9
    $region8: #{tpu_custom_call.1} parent=1 // pred_region
      _
    $region9: #{tpu_custom_call.1} parent=1 // pred_fallthru
      _
    // Predicated region
    $region10: #{tpu_custom_call.1} parent=1 // pred_check
      _
    $region11: #{tpu_custom_call.1} parent=1 // pred_check_branch
      %16 = sbr.rel (0) target = $region13
    $region12: #{tpu_custom_call.1} parent=1 // pred_region
      _
    $region13: #{tpu_custom_call.1} parent=1 // pred_fallthru
      _
    // Predicated region
    $region14: #{tpu_custom_call.1} parent=1 // pred_check
      _
    $region15: #{tpu_custom_call.1} parent=1 // pred_check_branch
      %18 = sbr.rel (0) target = $region17
    $region16: #{tpu_custom_call.1} parent=1 // pred_region
      _
    $region17: #{tpu_custom_call.1} parent=1 // pred_fallthru
      _
    // Predicated region
    $region18: #{tpu_custom_call.1} parent=1 // pred_check
      _
    $region19: #{tpu_custom_call.1} parent=1 // pred_check_branch
      %20 = sbr.rel (0) target = $region21
    $region20: #{tpu_custom_call.1} parent=1 // pred_region
      _
    $region21: #{tpu_custom_call.1} parent=1 // pred_fallthru
      _
    %v21 = vld [vmem:[%s1] sm:$0xff]
    %v22 = vld [vmem:[%s1 + $0x8] sm:$0xff]
    %v23 = vld [vmem:[%s3] sm:$0xff]
    %v24 = vld [vmem:[%s3 + $0x8] sm:$0xff]
    %v25 = vld [vmem:[%s4] sm:$0x1]
    %v26 = vld [vmem:[%s2] sm:$0xff]
    %v27 = vld [vmem:[%s2 + $0x8] sm:$0xff]
    %29 = vset.pattern.permute.xlu0 0
    %30 = vperm.xlu0 %29, %v26
    %v31 = vpop.permute.xlu0 %30
    %34 = vset.pattern.permute.xlu0 0
    %35 = vperm.xlu0 %34, %v27
    %v36 = vpop.permute.xlu0 %35
    %v38 = vld [vmem:[%s0] sm:$0x1]
    %vm39 = vcmask 7168
    %v41 = vsel %vm39, %v21, 0
    %v44 = vsel %vm39, %v22, 0
    %vm46 = vcmask 1040384
    %v48 = vsel %vm46, %v38, 0
    %50 = vmatprep.subr.mxu0 0.0
    %51 = vmatpush1.msra.mxu0 0.0
    %52 = vmatprep.subr.mxu0 0.0
    %53 = vmatpush1.msra.mxu0 0.0
    %54 = vmatprep.subr.mxu0 0.0
    %55 = vmatpush1.msra.mxu0 0.0
    %56 = vmatprep.subr.mxu0 0.0
    %57 = vmatpush1.msra.mxu0 0.0
    %58 = vmatprep.subr.mxu0 0.0
    %59 = vmatpush1.msra.mxu0 0.0
    %60 = vmatprep.subr.mxu0 0.0
    %61 = vmatpush1.msra.mxu0 0.0
    %62 = vmatprep.subr.mxu0 0.0
    %63 = vmatpush1.msra.mxu0 0.0
    %64 = vmatprep.subr.mxu0 0.0
    %65 = vmatpush1.msra.mxu0 0.0
    %66 = vmatprep.subr.mxu0 0.0
    %67 = vmatpush1.msra.mxu0 0.0
    %68 = vmatprep.subr.mxu0 0.0
    %69 = vmatpush1.msra.mxu0 0.0
    %70 = vmatprep.subr.mxu0 0.0
    %71 = vmatpush1.msra.mxu0 0.0
    %72 = vmatprep.subr.mxu0 0.0
    %73 = vmatpush1.msra.mxu0 0.0
    %74 = vmatprep.subr.mxu0 0.0
    %75 = vmatpush1.msra.mxu0 0.0
    %76 = vmatprep.subr.mxu0 0.0
    %77 = vmatpush1.msra.mxu0 0.0
    %78 = vmatprep.subr.mxu0 0.0
    %79 = vmatpush1.msra.mxu0 0.0
    %80 = vmatprep.subr.mxu0 0.0
    %81 = vmatpush1.msra.mxu0 %v48
    %82 = vmatprep.subr.mxu0 0.0
    %83 = vmatpush2.msra.mxu0 0.0
    %84 = vmatprep.subr.mxu0 0.0
    %85 = vmatpush2.msra.mxu0 0.0
    %86 = vmatprep.subr.mxu0 0.0
    %87 = vmatpush2.msra.mxu0 0.0
    %88 = vmatprep.subr.mxu0 0.0
    %89 = vmatpush2.msra.mxu0 0.0
    %90 = vmatprep.subr.mxu0 0.0
    %91 = vmatpush2.msra.mxu0 0.0
    %92 = vmatprep.subr.mxu0 0.0
    %93 = vmatpush2.msra.mxu0 0.0
    %94 = vmatprep.subr.mxu0 0.0
    %95 = vmatpush2.msra.mxu0 0.0
    %96 = vmatprep.subr.mxu0 0.0
    %97 = vmatpush2.msra.mxu0 0.0
    %98 = vmatprep.subr.mxu0 0.0
    %99 = vmatpush2.msra.mxu0 0.0
    %100 = vmatprep.subr.mxu0 0.0
    %101 = vmatpush2.msra.mxu0 0.0
    %102 = vmatprep.subr.mxu0 0.0
    %103 = vmatpush2.msra.mxu0 0.0
    %104 = vmatprep.subr.mxu0 0.0
    %105 = vmatpush2.msra.mxu0 0.0
    %106 = vmatprep.subr.mxu0 0.0
    %107 = vmatpush2.msra.mxu0 0.0
    %108 = vmatprep.subr.mxu0 0.0
    %109 = vmatpush2.msra.mxu0 0.0
    %110 = vmatprep.subr.mxu0 0.0
    %111 = vmatpush2.msra.mxu0 0.0
    %112 = vmatprep.subr.mxu0 0.0
    %113 = vmatpush2.msra.mxu0 0.0
    %114 = vmatprep.mubr.f32.mxu0 0.0
    %115 = vmatmul.mubr.f32.gmra.mxu0 %v41
    %v116 = vpop.f32.mrf.mxu0
    %v117 = vadd.f32 %v31, %v116
    %v118 = vpop.f32.mrf.mxu0
    %119 = vmatprep.mubr.f32.mxu0 0.0
    %120 = vmatmul.mubr.f32.gmra.mxu0 %v44
    %v121 = vpop.f32.mrf.mxu0
    %v122 = vadd.f32 %v36, %v121
    %v123 = vpop.f32.mrf.mxu0
    %124 = vdwg.mxu0
    %v125 = vmax.f32 %v117, 0.0
    %v126 = vmax.f32 %v122, 0.0
    %vm127 = vcmask 130048
    %v129 = vsel %vm127, %v23, 0
    %v132 = vsel %vm127, %v24, 0
    %134 = vmatprep.subr.mxu0 0.0
    %135 = vmatpush1.msra.mxu0 0.0
    %136 = vmatprep.subr.mxu0 0.0
    %137 = vmatpush1.msra.mxu0 0.0
    %138 = vmatprep.subr.mxu0 0.0
    %139 = vmatpush1.msra.mxu0 0.0
    %140 = vmatprep.subr.mxu0 0.0
    %141 = vmatpush1.msra.mxu0 0.0
    %142 = vmatprep.subr.mxu0 0.0
    %143 = vmatpush1.msra.mxu0 0.0
    %144 = vmatprep.subr.mxu0 0.0
    %145 = vmatpush1.msra.mxu0 0.0
    %146 = vmatprep.subr.mxu0 0.0
    %147 = vmatpush1.msra.mxu0 0.0
    %148 = vmatprep.subr.mxu0 0.0
    %149 = vmatpush1.msra.mxu0 0.0
    %150 = vmatprep.subr.mxu0 0.0
    %151 = vmatpush1.msra.mxu0 0.0
    %152 = vmatprep.subr.mxu0 0.0
    %153 = vmatpush1.msra.mxu0 0.0
    %154 = vmatprep.subr.mxu0 0.0
    %155 = vmatpush1.msra.mxu0 0.0
    %156 = vmatprep.subr.mxu0 0.0
    %157 = vmatpush1.msra.mxu0 0.0
    %158 = vmatprep.subr.mxu0 0.0
    %159 = vmatpush1.msra.mxu0 0.0
    %160 = vmatprep.subr.mxu0 0.0
    %161 = vmatpush1.msra.mxu0 0.0
    %162 = vmatprep.subr.mxu0 0.0
    %163 = vmatpush1.msra.mxu0 %v126
    %164 = vmatprep.subr.mxu0 0.0
    %165 = vmatpush1.msra.mxu0 %v125
    %166 = vmatprep.subr.mxu0 0.0
    %167 = vmatpush2.msra.mxu0 0.0
    %168 = vmatprep.subr.mxu0 0.0
    %169 = vmatpush2.msra.mxu0 0.0
    %170 = vmatprep.subr.mxu0 0.0
    %171 = vmatpush2.msra.mxu0 0.0
    %172 = vmatprep.subr.mxu0 0.0
    %173 = vmatpush2.msra.mxu0 0.0
    %174 = vmatprep.subr.mxu0 0.0
    %175 = vmatpush2.msra.mxu0 0.0
    %176 = vmatprep.subr.mxu0 0.0
    %177 = vmatpush2.msra.mxu0 0.0
    %178 = vmatprep.subr.mxu0 0.0
    %179 = vmatpush2.msra.mxu0 0.0
    %180 = vmatprep.subr.mxu0 0.0
    %181 = vmatpush2.msra.mxu0 0.0
    %182 = vmatprep.subr.mxu0 0.0
    %183 = vmatpush2.msra.mxu0 0.0
    %184 = vmatprep.subr.mxu0 0.0
    %185 = vmatpush2.msra.mxu0 0.0
    %186 = vmatprep.subr.mxu0 0.0
    %187 = vmatpush2.msra.mxu0 0.0
    %188 = vmatprep.subr.mxu0 0.0
    %189 = vmatpush2.msra.mxu0 0.0
    %190 = vmatprep.subr.mxu0 0.0
    %191 = vmatpush2.msra.mxu0 0.0
    %192 = vmatprep.subr.mxu0 0.0
    %193 = vmatpush2.msra.mxu0 0.0
    %194 = vmatprep.subr.mxu0 0.0
    %195 = vmatpush2.msra.mxu0 0.0
    %196 = vmatprep.subr.mxu0 0.0
    %197 = vmatpush2.msra.mxu0 0.0
    %198 = vmatprep.mubr.f32.mxu0 0.0
    %199 = vmatmul.mubr.f32.gmra.mxu0 %v129
    %v200 = vpop.f32.mrf.mxu0
    %v201 = vadd.f32 0.0, %v200
    %v202 = vpop.f32.mrf.mxu0
    %203 = vmatprep.mubr.f32.mxu0 0.0
    %204 = vmatmul.mubr.f32.gmra.mxu0 %v132
    %v205 = vpop.f32.mrf.mxu0
    %v206 = vadd.f32 0.0, %v205
    %v207 = vpop.f32.mrf.mxu0
    %208 = vdwg.mxu0
    %v209 = vmax.f32 %v201, 0.0
    %v210 = vmax.f32 %v206, 0.0
    %v212 = vsel %vm127, %v25, 0
    %214 = vmatprep.subr.mxu0 0.0
    %215 = vmatpush1.msra.mxu0 0.0
    %216 = vmatprep.subr.mxu0 0.0
    %217 = vmatpush1.msra.mxu0 0.0
    %218 = vmatprep.subr.mxu0 0.0
    %219 = vmatpush1.msra.mxu0 0.0
    %220 = vmatprep.subr.mxu0 0.0
    %221 = vmatpush1.msra.mxu0 0.0
    %222 = vmatprep.subr.mxu0 0.0
    %223 = vmatpush1.msra.mxu0 0.0
    %224 = vmatprep.subr.mxu0 0.0
    %225 = vmatpush1.msra.mxu0 0.0
    %226 = vmatprep.subr.mxu0 0.0
    %227 = vmatpush1.msra.mxu0 0.0
    %228 = vmatprep.subr.mxu0 0.0
    %229 = vmatpush1.msra.mxu0 0.0
    %230 = vmatprep.subr.mxu0 0.0
    %231 = vmatpush1.msra.mxu0 0.0
    %232 = vmatprep.subr.mxu0 0.0
    %233 = vmatpush1.msra.mxu0 0.0
    %234 = vmatprep.subr.mxu0 0.0
    %235 = vmatpush1.msra.mxu0 0.0
    %236 = vmatprep.subr.mxu0 0.0
    %237 = vmatpush1.msra.mxu0 0.0
    %238 = vmatprep.subr.mxu0 0.0
    %239 = vmatpush1.msra.mxu0 0.0
    %240 = vmatprep.subr.mxu0 0.0
    %241 = vmatpush1.msra.mxu0 0.0
    %242 = vmatprep.subr.mxu0 0.0
    %243 = vmatpush1.msra.mxu0 %v210
    %244 = vmatprep.subr.mxu0 0.0
    %245 = vmatpush1.msra.mxu0 %v209
    %246 = vmatprep.subr.mxu0 0.0
    %247 = vmatpush2.msra.mxu0 0.0
    %248 = vmatprep.subr.mxu0 0.0
    %249 = vmatpush2.msra.mxu0 0.0
    %250 = vmatprep.subr.mxu0 0.0
    %251 = vmatpush2.msra.mxu0 0.0
    %252 = vmatprep.subr.mxu0 0.0
    %253 = vmatpush2.msra.mxu0 0.0
    %254 = vmatprep.subr.mxu0 0.0
    %255 = vmatpush2.msra.mxu0 0.0
    %256 = vmatprep.subr.mxu0 0.0
    %257 = vmatpush2.msra.mxu0 0.0
    %258 = vmatprep.subr.mxu0 0.0
    %259 = vmatpush2.msra.mxu0 0.0
    %260 = vmatprep.subr.mxu0 0.0
    %261 = vmatpush2.msra.mxu0 0.0
    %262 = vmatprep.subr.mxu0 0.0
    %263 = vmatpush2.msra.mxu0 0.0
    %264 = vmatprep.subr.mxu0 0.0
    %265 = vmatpush2.msra.mxu0 0.0
    %266 = vmatprep.subr.mxu0 0.0
    %267 = vmatpush2.msra.mxu0 0.0
    %268 = vmatprep.subr.mxu0 0.0
    %269 = vmatpush2.msra.mxu0 0.0
    %270 = vmatprep.subr.mxu0 0.0
    %271 = vmatpush2.msra.mxu0 0.0
    %272 = vmatprep.subr.mxu0 0.0
    %273 = vmatpush2.msra.mxu0 0.0
    %274 = vmatprep.subr.mxu0 0.0
    %275 = vmatpush2.msra.mxu0 0.0
    %276 = vmatprep.subr.mxu0 0.0
    %277 = vmatpush2.msra.mxu0 0.0
    %278 = vmatprep.mubr.f32.mxu0 0.0
    %279 = vmatmul.mubr.f32.gmra.mxu0 %v212
    %v280 = vpop.f32.mrf.mxu0
    %v281 = vadd.f32 0.0, %v280
    %v282 = vpop.f32.mrf.mxu0
    %283 = vdwg.mxu0
    %vm284 = vcmask 57344
    %285 = vst.msk [vmem:[#allocation2] sm:$0x1] %vm284, %v281
    // Predicated region
    $region22: #{tpu_custom_call.1} parent=1 // pred_check
      _
    $region23: #{tpu_custom_call.1} parent=1 // pred_check_branch
      %287 = sbr.rel (0) target = $region25
    $region24: #{tpu_custom_call.1} parent=1 // pred_region
      %s289 = ssub.s32 16, 16
      %290 = vsyncadd [#allocation3], %s289
      %s292 = sshll.u32 [#allocation2], 4
      %s293 = int_to_ptr.vmem [resolvable:$true] %s292
      %295 = dma.vmem_to_hbm [thread:$0]  %s293, 16, %s5, [#allocation3]
    $region25: #{tpu_custom_call.1} parent=1 // pred_fallthru
      _
    // Predicated region
    $region26: #{tpu_custom_call.1} parent=1 // pred_check
      _
    $region27: #{tpu_custom_call.1} parent=1 // pred_check_branch
      %297 = sbr.rel (0) target = $region29
    $region28: #{tpu_custom_call.1} parent=1 // pred_region
      %298 = dma.done [#allocation3], 16
    $region29: #{tpu_custom_call.1} parent=1 // pred_fallthru
      _
    %299 = vsyncpa [#allocation3], 1

</llo_original>
